<compile_context>
chip_gen: v7x
topology: tpu7x:2x2x1
jax: 0.10.0
libtpu: 0.0.40
codegen_flags: <defaults>
</compile_context>

<pallas_src>
import math
import collections.abc as container_abcs
from itertools import repeat

import jax
import jax.numpy as jnp
from jax.experimental import pallas as pl
from jax.experimental.pallas import tpu as pltpu


def to_2tuple(x):
    if isinstance(x, container_abcs.Iterable):
        return tuple(x)
    return tuple(repeat(x, 2))


def _round_up(x, m):
    return ((x + m - 1) // m) * m


# ---------------------------------------------------------------------------
# Pallas kernel: fused (B*Np, K) x (K, E_pad) matmul + bias
# ---------------------------------------------------------------------------
def _patch_embed_kernel(p_ref, w_ref, b_ref, o_ref):
    # p_ref: (TILE_M, K) bf16   w_ref: (K, E_pad) bf16
    # b_ref: (1, E_pad) f32     o_ref: (TILE_M, E_pad) f32
    acc = jnp.dot(p_ref[...], w_ref[...], preferred_element_type=jnp.float32)
    o_ref[...] = acc + b_ref[...]


def patch_embed_matmul(patches, weight, bias, *, tile_m=512):
    """patches: (M, K) f32; weight: (K, E) f32; bias: (E,) f32 -> (M, E) f32."""
    M, K = patches.shape
    K2, E = weight.shape
    assert K == K2

    # Lane-dense output: pad E up to a multiple of 128 with zeros.
    E_pad = _round_up(E, 128)
    # M tile: largest <= tile_m that keeps divisibility; pad M up to a multiple.
    tile_m = min(tile_m, _round_up(M, 8))
    M_pad = _round_up(M, tile_m)

    patches_p = jnp.pad(patches, ((0, M_pad - M), (0, 0))).astype(jnp.bfloat16)
    weight_p = jnp.pad(weight, ((0, 0), (0, E_pad - E))).astype(jnp.bfloat16)
    bias_p = jnp.pad(bias.reshape(1, E), ((0, 0), (0, E_pad - E))).astype(jnp.float32)

    flops = 2 * M_pad * K * E_pad
    bytes_accessed = (M_pad * K * 2          # bf16 patches
                      + K * E_pad * 2        # bf16 weight
                      + E_pad * 4            # f32 bias
                      + M_pad * E_pad * 4)   # f32 output

    out = pl.pallas_call(
        _patch_embed_kernel,
        out_shape=jax.ShapeDtypeStruct((M_pad, E_pad), jnp.float32),
        grid_spec=pltpu.PrefetchScalarGridSpec(
            num_scalar_prefetch=0,
            grid=(M_pad // tile_m,),
            in_specs=[
                pl.BlockSpec((tile_m, K), lambda m: (m, 0)),
                pl.BlockSpec((K, E_pad), lambda m: (0, 0)),   # VMEM-resident
                pl.BlockSpec((1, E_pad), lambda m: (0, 0)),   # VMEM-resident
            ],
            out_specs=pl.BlockSpec((tile_m, E_pad), lambda m: (m, 0)),
        ),
        compiler_params=pltpu.CompilerParams(
            dimension_semantics=("parallel",),
            vmem_limit_bytes=64 * 1024 * 1024,
        ),
        cost_estimate=pl.CostEstimate(
            flops=flops, transcendentals=0, bytes_accessed=bytes_accessed),
    )(patches_p, weight_p, bias_p)

    return out[:M, :E]


# ---------------------------------------------------------------------------
# PatchEmbed2 forward (Conv2d with kernel=stride=patch) using the kernel above
# ---------------------------------------------------------------------------
class PatchEmbed2Pallas:
    """Image to Patch Embedding (forward only)."""

    def __init__(self, img_size=224, patch_size=16, in_chans=3, embed_dim=768,
                 *, key=None):
        img_size = to_2tuple(img_size)
        patch_size = to_2tuple(patch_size)
        num_patches = (img_size[1] // patch_size[1]) * (img_size[0] // patch_size[0])
        self.img_size = img_size
        self.patch_size = patch_size
        self.num_patches = num_patches
        self.in_chans = in_chans
        self.embed_dim = embed_dim

        if key is None:
            key = jax.random.PRNGKey(0)
        kw, kb = jax.random.split(key)
        # Conv2d(in_chans, embed_dim, kernel=patch, stride=patch) parameters
        fan_out = patch_size[0] * patch_size[1] * embed_dim
        self.proj_w = (jax.random.normal(
            kw, (embed_dim, in_chans, patch_size[0], patch_size[1]), jnp.float32)
            * math.sqrt(2.0 / fan_out))
        self.proj_b = jax.random.normal(kb, (embed_dim,), jnp.float32) * 0.02

    def forward(self, x):
        B, C, H, W = x.shape
        assert H == self.img_size[0] and W == self.img_size[1], (
            f"Input image size ({H}*{W}) doesn't match model "
            f"({self.img_size[0]}*{self.img_size[1]}).")
        ph, pw = self.patch_size
        Hp, Wp = H // ph, W // pw
        K = C * ph * pw

        # (B,C,H,W) -> (B,C,Hp,ph,Wp,pw) -> (B,Hp,Wp,C,ph,pw) -> (B*Np, K)
        patches = x.reshape(B, C, Hp, ph, Wp, pw)
        patches = jnp.transpose(patches, (0, 2, 4, 1, 3, 5))
        patches = patches.reshape(B * Hp * Wp, K).astype(jnp.float32)

        # conv weight (E,C,ph,pw) -> (K, E); (c,kh,kw) flatten order matches patches
        w = self.proj_w.reshape(self.embed_dim, K).T.astype(jnp.float32)

        out = patch_embed_matmul(patches, w, self.proj_b)        # (B*Np, E)
        out = out.reshape(B, Hp, Wp, self.embed_dim)
        return jnp.transpose(out, (0, 3, 1, 2))                  # NCHW conv output

    __call__ = forward


if __name__ == "__main__":
    key = jax.random.PRNGKey(0)
    k_param, k_x = jax.random.split(key)

    B, C, img_size, patch_size, embed_dim = 2, 3, 16, 4, 32

    model = PatchEmbed2Pallas(img_size=img_size, patch_size=patch_size,
                              in_chans=C, embed_dim=embed_dim, key=k_param)

    x = jax.random.normal(k_x, (B, C, img_size, img_size), jnp.float32)

    out = model.forward(x)
    out = jax.block_until_ready(out)

    Hp = Wp = img_size // patch_size
    assert out.shape == (B, embed_dim, Hp, Wp)
    assert jnp.all(jnp.isfinite(out))

    # Reference: strided conv (the exact PatchEmbed2.proj semantics).
    ref = jax.lax.conv_general_dilated(
        x, model.proj_w, window_strides=(patch_size, patch_size),
        padding="VALID", dimension_numbers=("NCHW", "OIHW", "NCHW"))
    ref = ref + model.proj_b.reshape(1, -1, 1, 1)
    assert jnp.allclose(out, ref, atol=2e-2, rtol=2e-2), (
        float(jnp.max(jnp.abs(out - ref))))

    print("KERNEL_OK")
</pallas_src>

<mosaic_0001>
module attributes {stable_mosaic.version = 11 : i64} {
  func.func @_patch_embed_kernel(%arg0: i32, %arg1: memref<32x48xbf16, #tpu.memory_space<vmem>>, %arg2: memref<48x128xbf16, #tpu.memory_space<vmem>>, %arg3: memref<1x128xf32, #tpu.memory_space<vmem>>, %arg4: memref<32x128xf32, #tpu.memory_space<vmem>>) attributes {dimension_semantics = [#tpu.dimension_semantics<parallel>], iteration_bounds = array<i64: 1>, scalar_prefetch = 0 : i64, scratch_operands = 0 : i64, tpu.core_type = #tpu.core_type<tc>, window_params = [{transform_indices = @transform_0, window_bounds = array<i64: 32, 48>}, {pipeline_mode = #tpu.pipeline_mode<synchronous>, transform_indices = @transform_1, window_bounds = array<i64: 48, 128>}, {pipeline_mode = #tpu.pipeline_mode<synchronous>, transform_indices = @transform_2, window_bounds = array<i64: 1, 128>}, {transform_indices = @transform_3, window_bounds = array<i64: 32, 128>}]} {
    %c0 = arith.constant 0 : index
    %c0_0 = arith.constant 0 : index
    %0 = vector.load %arg1[%c0, %c0_0] : memref<32x48xbf16, #tpu.memory_space<vmem>>, vector<32x48xbf16>
    %c0_1 = arith.constant 0 : index
    %c0_2 = arith.constant 0 : index
    %1 = vector.load %arg2[%c0_1, %c0_2] : memref<48x128xbf16, #tpu.memory_space<vmem>>, vector<48x128xbf16>
    %cst = arith.constant dense<0.000000e+00> : vector<32x128xf32>
    %2 = tpu.matmul %0, %1, %cst {dimension_numbers = #tpu.dot_dimension_numbers<[1], [0], [0], [1], [0, 0, 1, 1], [], []>} : vector<32x48xbf16>, vector<48x128xbf16>, vector<32x128xf32> -> vector<32x128xf32>
    %c0_3 = arith.constant 0 : index
    %c0_4 = arith.constant 0 : index
    %3 = vector.load %arg3[%c0_3, %c0_4] : memref<1x128xf32, #tpu.memory_space<vmem>>, vector<1x128xf32>
    %4 = vector.broadcast %3 : vector<1x128xf32> to vector<32x128xf32>
    %5 = arith.addf %2, %4 : vector<32x128xf32>
    %c0_5 = arith.constant 0 : index
    %c0_6 = arith.constant 0 : index
    %6 = vector.load %arg4[%c0_5, %c0_6] : memref<32x128xf32, #tpu.memory_space<vmem>>, vector<32x128xf32>
    tpu.vector_store %arg4[%c0_5, %c0_6], %5 {strides = array<i32>} : memref<32x128xf32, #tpu.memory_space<vmem>>, vector<32x128xf32>,
    return
  }
  func.func @transform_0(%arg0: i32) -> (i32, i32) {
    %c0_i32 = arith.constant 0 : i32
    %c0_i32_0 = arith.constant 0 : i32
    return %arg0, %c0_i32 : i32, i32
  }
  func.func @transform_1(%arg0: i32) -> (i32, i32) {
    %c0_i32 = arith.constant 0 : i32
    %c0_i32_0 = arith.constant 0 : i32
    %c0_i32_1 = arith.constant 0 : i32
    return %c0_i32, %c0_i32_0 : i32, i32
  }
  func.func @transform_2(%arg0: i32) -> (i32, i32) {
    %c0_i32 = arith.constant 0 : i32
    %c0_i32_0 = arith.constant 0 : i32
    %c0_i32_1 = arith.constant 0 : i32
    return %c0_i32, %c0_i32_0 : i32, i32
  }
  func.func @transform_3(%arg0: i32) -> (i32, i32) {
    %c0_i32 = arith.constant 0 : i32
    %c0_i32_0 = arith.constant 0 : i32
    return %arg0, %c0_i32 : i32, i32
  }
}

</mosaic_0001>

<llo_original>
// kernel: tpu_custom_call.1
$region0: #{tpu_custom_call.1}
  #allocation0 [shape = 'u32[]', space=smem, size = 0x4, offset = 0x4, fixed_abs, tag = 'smem constant byte address 0x4 - core index']
  #allocation1 [shape = 'u32[144,128]{1,0:T(1,128)}', space=vmem, size = 0x12000, scoped, tag = 'internal scratch']
  %s0 = inlined_call_operand.hbm [shape: bf16[32,48], index: 0, kind: input, shape index: {}]
  %s1 = inlined_call_operand.hbm [shape: bf16[48,128], index: 1, kind: input, shape index: {}]
  %s2 = inlined_call_operand.hbm [shape: f32[1,128], index: 2, kind: input, shape index: {}]
  %s3 = inlined_call_operand.hbm [shape: f32[32,128], index: 3, kind: output, shape index: {}]
  %s4 = sld [smem:[#allocation0]]
  $region34: #{tpu_custom_call.1} parent=0
    _
  %s6 = ssub.s32 1, %s4
  %s7 = scalar_select 0, %s6, %s4
  $region1: #{tpu_custom_call.1} parent=0
    #allocation2 [shape = 'u8[8192]{0}', space=vmem, size = 0x2000, scoped, tag = 'input window, operand 0, single buffered']
    #allocation3 [shape = 's32[1]{0}', space=sflag, size = 0x4, scoped, tag = 'scoped memory for tpu_custom_call.1']
    #allocation4 [shape = 's32[1]{0}', space=sflag, size = 0x4, scoped, tag = 'scoped memory for tpu_custom_call.1']
    #allocation5 [shape = 'u8[12288]{0}', space=vmem, size = 0x3000, scoped, tag = 'input window, operand 1, single buffered']
    #allocation6 [shape = 's32[1]{0}', space=sflag, size = 0x4, scoped, tag = 'scoped memory for tpu_custom_call.1']
    #allocation7 [shape = 'u8[512]{0}', space=vmem, size = 0x400, scoped, tag = 'input window, operand 2, single buffered']
    #allocation8 [shape = 'u8[16384]{0}', space=vmem, size = 0x4000, scoped, tag = 'output window, operand 0, single buffered']
    %8 = vsyncpa [#allocation3], 0
    %9 = vsyncpa [#allocation6], 0
    %10 = vsyncpa [#allocation4], 0
    // Predicated region
    $region2: #{tpu_custom_call.1} parent=1 // pred_check
      _
    $region3: #{tpu_custom_call.1} parent=1 // pred_check_branch
      %12 = sbr.rel (0) target = $region5
    $region4: #{tpu_custom_call.1} parent=1 // pred_region
      %s14 = ssub.s32 256, 256
      %15 = vsyncadd [#allocation3], %s14
      %s16 = sshll.u32 [#allocation2], 4
      %s17 = int_to_ptr.vmem [resolvable:$true] %s16
      %22 = dma.hbm_to_vmem [thread:$0]  %s0, 256, %s17, [#allocation3], 64, 64, 4
    $region5: #{tpu_custom_call.1} parent=1 // pred_fallthru
      _
    // Predicated region
    $region6: #{tpu_custom_call.1} parent=1 // pred_check
      _
    $region7: #{tpu_custom_call.1} parent=1 // pred_check_branch
      %24 = sbr.rel (0) target = $region9
    $region8: #{tpu_custom_call.1} parent=1 // pred_region
      %s26 = ssub.s32 384, 384
      %27 = vsyncadd [#allocation6], %s26
      %s28 = sshll.u32 [#allocation5], 4
      %s29 = int_to_ptr.vmem [resolvable:$true] %s28
      %34 = dma.hbm_to_vmem [thread:$0]  %s1, 384, %s29, [#allocation6], 64, 64, 4
    $region9: #{tpu_custom_call.1} parent=1 // pred_fallthru
      _
    // Predicated region
    $region10: #{tpu_custom_call.1} parent=1 // pred_check
      _
    $region11: #{tpu_custom_call.1} parent=1 // pred_check_branch
      %36 = sbr.rel (0) target = $region13
    $region12: #{tpu_custom_call.1} parent=1 // pred_region
      %s38 = ssub.s32 16, 16
      %39 = vsyncadd [#allocation6], %s38
      %s41 = sshll.u32 [#allocation7], 4
      %s42 = int_to_ptr.vmem [resolvable:$true] %s41
      %44 = dma.hbm_to_vmem [thread:$0]  %s2, 16, %s42, [#allocation6]
    $region13: #{tpu_custom_call.1} parent=1 // pred_fallthru
      _
    // Predicated region
    $region14: #{tpu_custom_call.1} parent=1 // pred_check
      _
    $region15: #{tpu_custom_call.1} parent=1 // pred_check_branch
      %46 = sbr.rel (0) target = $region17
    $region16: #{tpu_custom_call.1} parent=1 // pred_region
      %47 = dma.done [#allocation3], 256
    $region17: #{tpu_custom_call.1} parent=1 // pred_fallthru
      _
    // Predicated region
    $region18: #{tpu_custom_call.1} parent=1 // pred_check
      _
    $region19: #{tpu_custom_call.1} parent=1 // pred_check_branch
      %49 = sbr.rel (0) target = $region21
    $region20: #{tpu_custom_call.1} parent=1 // pred_region
      %50 = dma.done [#allocation6], 384
    $region21: #{tpu_custom_call.1} parent=1 // pred_fallthru
      _
    // Predicated region
    $region22: #{tpu_custom_call.1} parent=1 // pred_check
      _
    $region23: #{tpu_custom_call.1} parent=1 // pred_check_branch
      %52 = sbr.rel (0) target = $region25
    $region24: #{tpu_custom_call.1} parent=1 // pred_region
      %53 = dma.done [#allocation6], 16
    $region25: #{tpu_custom_call.1} parent=1 // pred_fallthru
      _
    %v55 = vld [vmem:[#allocation2] sm:$0xf]
    %v56 = vld [vmem:[#allocation2 + $0x4] sm:$0xf]
    %v57 = vld [vmem:[#allocation2 + $0x8] sm:$0xf]
    %v58 = vld [vmem:[#allocation2 + $0xc] sm:$0xf]
    %v59 = vld [vmem:[#allocation5] sm:$0xf]
    %v60 = vld [vmem:[#allocation5 + $0x4] sm:$0xf]
    %v61 = vld [vmem:[#allocation5 + $0x8] sm:$0xf]
    %v62 = vld [vmem:[#allocation5 + $0xc] sm:$0xf]
    %v63 = vld [vmem:[#allocation5 + $0x10] sm:$0xf]
    %v64 = vld [vmem:[#allocation5 + $0x14] sm:$0xf]
    %v65 = vld [vmem:[#allocation7] sm:$0x1]
    %v67 = vlaneseq
    %v68 = vshrl.u32 %v67, 7
    %v69 = vsub.s32 0, %v68
    %v70 = vrot.slane %v65, %v69
    %v76 = vunpack.c.l.b16 %v55
    %v77 = vunpack.c.l.b16 %v56
    %v78 = vunpack.c.l.b16 %v57
    %v79 = vunpack.c.l.b16 %v58
    %v80 = vpack.c.b16 %v77, %v76
    %v81 = vpack.c.b16 %v79, %v78
    %v88 = vunpack.c.l.b16 %v59
    %v89 = vunpack.c.l.b16 %v60
    %v90 = vunpack.c.l.b16 %v61
    %v91 = vunpack.c.l.b16 %v62
    %v92 = vunpack.c.l.b16 %v63
    %v93 = vunpack.c.l.b16 %v64
    %v94 = vpack.c.b16 %v89, %v88
    %v95 = vpack.c.b16 %v91, %v90
    %v96 = vpack.c.b16 %v93, %v92
    %vm100 = vcmask 392192
    %v102 = vsel %vm100, %v80, 0
    %v105 = vsel %vm100, %v81, 0
    %107 = vmatprep.subr.bf16.mxu0 0
    %108 = vmatpush1.bf16.msra.mxu0 %v94
    %109 = vmatprep.subr.bf16.mxu0 0
    %110 = vmatpush1.bf16.msra.mxu0 %v95
    %111 = vmatprep.subr.bf16.mxu0 0
    %112 = vmatpush1.bf16.msra.mxu0 %v96
    %113 = vmatprep.subr.bf16.mxu0 0
    %114 = vmatpush1.bf16.msra.mxu0 0
    %115 = vmatprep.subr.bf16.mxu0 0
    %116 = vmatpush1.bf16.msra.mxu0 0
    %117 = vmatprep.subr.bf16.mxu0 0
    %118 = vmatpush1.bf16.msra.mxu0 0
    %119 = vmatprep.subr.bf16.mxu0 0
    %120 = vmatpush1.bf16.msra.mxu0 0
    %121 = vmatprep.subr.bf16.mxu0 0
    %122 = vmatpush1.bf16.msra.mxu0 0
    %123 = vmatprep.subr.bf16.mxu0 0
    %124 = vmatpush1.bf16.msra.mxu0 0
    %125 = vmatprep.subr.bf16.mxu0 0
    %126 = vmatpush1.bf16.msra.mxu0 0
    %127 = vmatprep.subr.bf16.mxu0 0
    %128 = vmatpush1.bf16.msra.mxu0 0
    %129 = vmatprep.subr.bf16.mxu0 0
    %130 = vmatpush1.bf16.msra.mxu0 0
    %131 = vmatprep.subr.bf16.mxu0 0
    %132 = vmatpush1.bf16.msra.mxu0 0
    %133 = vmatprep.subr.bf16.mxu0 0
    %134 = vmatpush1.bf16.msra.mxu0 0
    %135 = vmatprep.subr.bf16.mxu0 0
    %136 = vmatpush1.bf16.msra.mxu0 0
    %137 = vmatprep.subr.bf16.mxu0 0
    %138 = vmatpush1.bf16.msra.mxu0 0
    %139 = vmatprep.mubr.bf16.mxu0 0
    %140 = vmatmul.mubr.bf16.gmra.mrb[0].mxu0 %v102
    %v141 = vpop.f32.mrb[0].mxu0
    %v142 = vadd.f32 %v70, %v141
    %v143 = vpop.f32.mrb[0].mxu0
    %v144 = vpop.f32.mrb[0].mxu0
    %v145 = vadd.f32 %v70, %v144
    %v146 = vpop.f32.mrb[0].mxu0
    %147 = vmatprep.mubr.bf16.mxu0 0
    %148 = vmatmul.mubr.bf16.gmra.mrb[0].mxu0 %v105
    %v149 = vpop.f32.mrb[0].mxu0
    %v150 = vadd.f32 %v70, %v149
    %v151 = vpop.f32.mrb[0].mxu0
    %v152 = vpop.f32.mrb[0].mxu0
    %v153 = vadd.f32 %v70, %v152
    %v154 = vpop.f32.mrb[0].mxu0
    %155 = vdwg.mxu0
    %156 = vst [vmem:[#allocation8] sm:$0xff] %v142
    %157 = vst [vmem:[#allocation8 + $0x8] sm:$0xff] %v145
    %158 = vst [vmem:[#allocation8 + $0x10] sm:$0xff] %v150
    %159 = vst [vmem:[#allocation8 + $0x18] sm:$0xff] %v153
    // Predicated region
    $region26: #{tpu_custom_call.1} parent=1 // pred_check
      _
    $region27: #{tpu_custom_call.1} parent=1 // pred_check_branch
      %161 = sbr.rel (0) target = $region29
    $region28: #{tpu_custom_call.1} parent=1 // pred_region
      %s163 = ssub.s32 512, 512
      %164 = vsyncadd [#allocation4], %s163
      %s165 = sshll.u32 [#allocation8], 4
      %s166 = int_to_ptr.vmem [resolvable:$true] %s165
      %171 = dma.vmem_to_hbm [thread:$0]  %s166, 512, %s3, [#allocation4], 128, 128, 8
    $region29: #{tpu_custom_call.1} parent=1 // pred_fallthru
      _
    // Predicated region
    $region30: #{tpu_custom_call.1} parent=1 // pred_check
      _
    $region31: #{tpu_custom_call.1} parent=1 // pred_check_branch
      %173 = sbr.rel (0) target = $region33
    $region32: #{tpu_custom_call.1} parent=1 // pred_region
      %174 = dma.done [#allocation4], 512
    $region33: #{tpu_custom_call.1} parent=1 // pred_fallthru
      _
    %175 = vsyncpa [#allocation3], 1
    %176 = vsyncpa [#allocation6], 1
    %177 = vsyncpa [#allocation4], 1

</llo_original>
